<compile_context>
chip_gen: v6e
topology: v6e:2x2x1
jax: 0.10.0
libtpu: 0.0.40
codegen_flags: <defaults>
</compile_context>

<pallas_src>
import math

import jax
import jax.numpy as jnp
from jax.experimental import pallas as pl
from jax.experimental.pallas import tpu as pltpu


def _round_up(x, m):
    return ((x + m - 1) // m) * m


def _cdiv(a, b):
    return -(-a // b)


_TARGET_STEP_BYTES = 3 * 1024 * 1024   # ~2-6 MiB streamed per grid step
_MIN_GRID_STEPS = 8                    # deep pipelining when p allows
_N_ROWS_MAX = 512                      # split the batch beyond this many rows
_VMEM_HEADROOM = 8 * 1024 * 1024       # compiler internal scratch etc.


def _vmem_limit_bytes():
    """Generation-aware scoped-VMEM limit (v7x has 64 MiB/TC, v5e/v6e 128 MiB)."""
    cap = None
    try:
        info = pltpu.get_tpu_info()
        cap = getattr(info, "vmem_capacity_bytes", None)
    except Exception:
        cap = None
    if not cap:
        cap = 64 * 1024 * 1024  # conservative fallback = v7x per-TC capacity
    return max(32 * 1024 * 1024, min(cap // 2, 64 * 1024 * 1024))


def _choose_part_block(p, per_part_stream, per_part_live, block_budget):
    """Pick parts-per-step (pb), number of part grid steps, and padded p."""
    pb = max(1, _TARGET_STEP_BYTES // max(1, per_part_stream))
    pb = min(pb, max(1, block_budget // max(1, per_part_live)))
    if p >= _MIN_GRID_STEPS:
        pb = min(pb, p // _MIN_GRID_STEPS)   # keep >= 8 steps when p allows
    pb = max(1, min(pb, p))
    steps = _cdiv(p, pb)
    if p >= 2 and steps % 2 == 1:
        # v7x megacore: even step count so both TensorCores get equal real
        # work; pick the nearby even step count that minimizes part padding.
        best = None
        for s in range(max(2, steps - 3), steps + 4):
            if s % 2:
                continue
            b = _cdiv(p, s)
            cand = (b * s - p, abs(s - steps), s, b)
            if best is None or cand[:2] < best[:2]:
                best = cand
        if best is not None:
            steps, pb = best[2], best[3]
    return pb, steps, pb * steps


def _sep_fc_kernel(x_ref, w_ref, o_ref):
    # x_ref: (PB, NB, c_in), w_ref: (PB, c_in, c_out), o_ref: (PB, NB, c_out)
    # Batched per-part matmul with f32 accumulation on the MXU.
    o_ref[...] = jnp.einsum(
        "pnc,pco->pno",
        x_ref[...],
        w_ref[...],
        preferred_element_type=jnp.float32,
    ).astype(o_ref.dtype)


def separate_fcs_part_major(x_pm, fc_bin, *, out_dtype=None):
    """Part-major core: x_pm [p, n, c_in], fc_bin [p, c_in, c_out] -> [p, n, c_out]."""
    p, n, c_in = x_pm.shape
    p_w, c_in_w, c_out = fc_bin.shape
    assert p == p_w and c_in == c_in_w
    if out_dtype is None:
        out_dtype = x_pm.dtype

    in_itemsize = jnp.dtype(x_pm.dtype).itemsize
    w_itemsize = jnp.dtype(fc_bin.dtype).itemsize
    out_itemsize = jnp.dtype(out_dtype).itemsize

    # ---- n blocking: weights stay resident across the inner n axis ---------
    if n > _N_ROWS_MAX:
        n8 = _round_up(n, 8)
        n_steps = _cdiv(n8, _N_ROWS_MAX)
        n_blk = _round_up(_cdiv(n8, n_steps), 8)
        n_pad = n_blk * n_steps
    else:
        n_blk, n_steps, n_pad = n, 1, n

    # ---- part blocking ------------------------------------------------------
    per_part_stream = (
        n_blk * c_in * in_itemsize          # x block
        + c_in * c_out * w_itemsize         # weight block (dominant traffic)
        + n_blk * c_out * out_itemsize      # output block
    )
    # 2x for double-buffered blocks + the f32 einsum intermediate per part.
    per_part_live = 2 * per_part_stream + n_blk * c_out * 4
    vmem_limit = _vmem_limit_bytes()
    block_budget = max(4 * 1024 * 1024, vmem_limit - _VMEM_HEADROOM)
    pb, p_steps, p_pad = _choose_part_block(
        p, per_part_stream, per_part_live, block_budget
    )

    # Guarded padding: skipped entirely in the already-aligned common case.
    if p_pad > p or n_pad > n:
        x_pm = jnp.pad(x_pm, ((0, p_pad - p), (0, n_pad - n), (0, 0)))
    if p_pad > p:
        fc_bin = jnp.pad(fc_bin, ((0, p_pad - p), (0, 0), (0, 0)))

    out_pm = pl.pallas_call(
        _sep_fc_kernel,
        out_shape=jax.ShapeDtypeStruct((p_pad, n_pad, c_out), out_dtype),
        grid=(p_steps, n_steps),
        in_specs=[
            pl.BlockSpec((pb, n_blk, c_in), lambda i, j: (i, j, 0)),
            # Weight block index is independent of the inner n axis -> fetched
            # once per part block, stays VMEM-resident across the n steps.
            pl.BlockSpec((pb, c_in, c_out), lambda i, j: (i, 0, 0)),
        ],
        out_specs=pl.BlockSpec((pb, n_blk, c_out), lambda i, j: (i, j, 0)),
        compiler_params=pltpu.CompilerParams(
            dimension_semantics=("parallel", "arbitrary"),
            vmem_limit_bytes=vmem_limit,
            allow_input_fusion=[True, True],
        ),
    )(x_pm, fc_bin)

    if p_pad > p or n_pad > n:
        out_pm = out_pm[:p, :n, :]
    return out_pm


def separate_fcs(x, fc_bin, *, compute_dtype=jnp.bfloat16):
    """x: [n, c_in, p], fc_bin: [p, c_in, c_out] -> out: [n, c_out, p].

    compute_dtype: operand dtype for the MXU (default bf16 halves HBM weight
    traffic on this memory-bound kernel); accumulation is f32 and the output
    is returned in x.dtype.  Pass compute_dtype=None for an exact f32 path.
    """
    n, c_in, p = x.shape
    p_w, c_in_w, c_out = fc_bin.shape
    assert p == p_w and c_in == c_in_w
    out_dtype = x.dtype

    if compute_dtype is not None:
        x = x.astype(compute_dtype)
        fc_bin = fc_bin.astype(compute_dtype)

    # Layout glue required by the module API ([n,c_in,p] <-> part-major).
    # TODO(synk): keep the surrounding model part-major end-to-end and call
    # separate_fcs_part_major directly to drop both transposes.
    x_pm = jnp.transpose(x, (2, 0, 1))
    out_pm = separate_fcs_part_major(x_pm, fc_bin, out_dtype=out_dtype)
    return jnp.transpose(out_pm, (1, 2, 0))


def init_fc_bin(key, parts_num, in_channels, out_channels, dtype=jnp.float32):
    """Xavier-uniform init matching torch.nn.init.xavier_uniform_ on a
    [parts_num, in_channels, out_channels] tensor (fan_in = in*out,
    fan_out = parts*out per PyTorch's fan computation for >2D tensors)."""
    fan_in = in_channels * out_channels
    fan_out = parts_num * out_channels
    bound = math.sqrt(6.0 / (fan_in + fan_out))
    return jax.random.uniform(
        key, (parts_num, in_channels, out_channels),
        minval=-bound, maxval=bound, dtype=dtype,
    )


if __name__ == "__main__":
    parts_num = 8
    in_channels = 32
    out_channels = 16
    n = 2

    key = jax.random.PRNGKey(0)
    kx, kw = jax.random.split(key)

    x = jax.random.normal(kx, (n, in_channels, parts_num), dtype=jnp.float32)
    fc_bin = init_fc_bin(kw, parts_num, in_channels, out_channels)

    # Pure-JAX reference (same math, no Pallas).
    ref = jnp.transpose(
        jnp.matmul(jnp.transpose(x, (2, 0, 1)), fc_bin), (1, 2, 0)
    )

    # Exact f32 path: tight tolerance.
    out_f32 = jax.block_until_ready(separate_fcs(x, fc_bin, compute_dtype=None))
    assert out_f32.shape == (n, out_channels, parts_num)
    assert out_f32.dtype == x.dtype
    assert jnp.allclose(out_f32, ref, atol=1e-5, rtol=1e-5)

    # Default bf16-operand path (f32 accumulation, f32 output): looser tol.
    out_bf16 = jax.block_until_ready(separate_fcs(x, fc_bin))
    assert out_bf16.shape == (n, out_channels, parts_num)
    assert out_bf16.dtype == x.dtype
    assert jnp.allclose(out_bf16, ref, atol=2e-2, rtol=2e-2)

    print("KERNEL_OK")
</pallas_src>

<mosaic_0001>
module attributes {stable_mosaic.version = 11 : i64} {
  func.func @_sep_fc_kernel(%arg0: i32, %arg1: i32, %arg2: memref<1x2x32xf32, #tpu.memory_space<vmem>>, %arg3: memref<1x32x16xf32, #tpu.memory_space<vmem>>, %arg4: memref<1x2x16xf32, #tpu.memory_space<vmem>>) attributes {dimension_semantics = [#tpu.dimension_semantics<parallel>, #tpu.dimension_semantics<arbitrary>], iteration_bounds = array<i64: 8, 1>, scalar_prefetch = 0 : i64, scratch_operands = 0 : i64, tpu.core_type = #tpu.core_type<tc>, window_params = [{transform_indices = @transform_0, window_bounds = array<i64: 1, 2, 32>}, {transform_indices = @transform_1, window_bounds = array<i64: 1, 32, 16>}, {transform_indices = @transform_2, window_bounds = array<i64: 1, 2, 16>}]} {
    %c0 = arith.constant 0 : index
    %c0_0 = arith.constant 0 : index
    %c0_1 = arith.constant 0 : index
    %0 = vector.load %arg2[%c0, %c0_0, %c0_1] : memref<1x2x32xf32, #tpu.memory_space<vmem>>, vector<1x2x32xf32>
    %c0_2 = arith.constant 0 : index
    %c0_3 = arith.constant 0 : index
    %c0_4 = arith.constant 0 : index
    %1 = vector.load %arg3[%c0_2, %c0_3, %c0_4] : memref<1x32x16xf32, #tpu.memory_space<vmem>>, vector<1x32x16xf32>
    "tpu.trace_start"() <{level = 10 : i32, message = "pnc,pco->pno"}> : () -> ()
    %cst = arith.constant dense<0.000000e+00> : vector<1x2x16xf32>
    %2 = tpu.matmul %0, %1, %cst {dimension_numbers = #tpu.dot_dimension_numbers<[2], [1], [1], [2], [0, 0, 0, 1, 1, 2], [0], [0]>} : vector<1x2x32xf32>, vector<1x32x16xf32>, vector<1x2x16xf32> -> vector<1x2x16xf32>
    "tpu.trace_stop"() : () -> ()
    %c0_5 = arith.constant 0 : index
    %c0_6 = arith.constant 0 : index
    %c0_7 = arith.constant 0 : index
    %3 = vector.load %arg4[%c0_5, %c0_6, %c0_7] : memref<1x2x16xf32, #tpu.memory_space<vmem>>, vector<1x2x16xf32>
    tpu.vector_store %arg4[%c0_5, %c0_6, %c0_7], %2 {strides = array<i32>} : memref<1x2x16xf32, #tpu.memory_space<vmem>>, vector<1x2x16xf32>,
    return
  }
  func.func @transform_0(%arg0: i32, %arg1: i32) -> (i32, i32, i32) {
    %c0_i32 = arith.constant 0 : i32
    %c0_i32_0 = arith.constant 0 : i32
    return %arg0, %arg1, %c0_i32 : i32, i32, i32
  }
  func.func @transform_1(%arg0: i32, %arg1: i32) -> (i32, i32, i32) {
    %c0_i32 = arith.constant 0 : i32
    %c0_i32_0 = arith.constant 0 : i32
    %c0_i32_1 = arith.constant 0 : i32
    return %arg0, %c0_i32, %c0_i32_0 : i32, i32, i32
  }
  func.func @transform_2(%arg0: i32, %arg1: i32) -> (i32, i32, i32) {
    %c0_i32 = arith.constant 0 : i32
    %c0_i32_0 = arith.constant 0 : i32
    return %arg0, %arg1, %c0_i32 : i32, i32, i32
  }
}

</mosaic_0001>

<llo_original>
// kernel: tpu_custom_call.1
$region0: #{tpu_custom_call.1}
  #allocation0 [shape = 'u32[]', space=smem, size = 0x4, offset = 0x4, fixed_abs, tag = 'smem constant byte address 0x4 - core index']
  #allocation1 [shape = 'u32[144,128]{1,0:T(1,128)}', space=vmem, size = 0x12000, scoped, tag = 'internal scratch']
  %s0 = inlined_call_operand.vmem [shape: f32[8,2,32], index: 0, kind: input, shape index: {}]
  %s1 = inlined_call_operand.vmem [shape: f32[8,32,16], index: 1, kind: input, shape index: {}]
  %s2 = inlined_call_operand.hbm [shape: f32[8,2,16], index: 2, kind: output, shape index: {}]
  %s3 = sld [smem:[#allocation0]]
  $region41: #{tpu_custom_call.1} parent=0
    _
  %s5 = ssub.s32 1, %s3
  %s6 = scalar_select 0, %s5, %s3
  $region1: #{tpu_custom_call.1} parent=0
    #allocation2 [shape = 'u8[2048]{0}', space=vmem, size = 0x800, scoped, tag = 'output window, operand 0']
    #allocation3 [shape = 's32[2]{0}', space=sflag, size = 0x8, scoped, tag = 'scoped memory for tpu_custom_call.1']
    %7 = vsyncpa [#allocation3], 0
    %s8 = scalar_lea.sflag [#allocation3], 1
    %9 = vsyncpa %s8, 0
    loop: start=0, step=1, limit=10
    $region2: #{tpu_custom_call.1} parent=1 // loop_pre_header
      _
    $region3: #{tpu_custom_call.1} parent=1 // loop_header
      %s11 = sphi 0, %s15
      %p12 = scmp.ge.s32.totalorder %s11, 10
      %s18 = sphi 0, %s30
      %s19 = sphi 0, %s26
      %s20 = sphi 0, %s18
      %s21 = sphi 0, %s19
      %s22 = sphi 0, %s20
      %s23 = sphi 0, %s21
      %s35 = sphi 0, %s37
      %s38 = sphi 0, %s35
      %s39 = sphi 0, %s38
      %s55 = sphi 0, %s39
      %s61 = sphi 0, %s63
      %s64 = sphi 0, %s61
      %s65 = sphi 0, %s64
      %s81 = sphi 0, %s65
      %s89 = sphi 0, %s91
      %s92 = sphi 0, %s89
      %s93 = sphi 0, %s92
      %s109 = sphi 0, %s93
    $region4: #{tpu_custom_call.1} parent=1 // loop_header_branch
      %14 = sbr.rel (%p12) target = $region8
    $region5: #{tpu_custom_call.1} parent=1 // loop_body
      %s16 = ssub.s32 %s11, 1
      %s17 = ssub.s32 %s11, 2
      %s24 = sadd.s32 1, %s19
      %p25 = scmp.ge.s32.totalorder %s24, 1
      %s26 = scalar_select %p25, 0, %s24
      %s27 = sadd.s32 1, %s18
      %s28 = scalar_select %p25, %s27, %s18
      %p29 = scmp.ge.s32.totalorder %s28, 8
      %s30 = scalar_select %p29, 0, %s28
      %s31 = ssub.s32 %s18, %s30
      %s32 = ssub.s32 %s19, %s26
      %s33 = sor.u32 %s31, %s32
      %p34 = scmp.eq.s32.totalorder %s33, 0
      %s36 = sadd.s32 %s35, 1
      %s37 = scalar_select %p34, %s35, %s36
      %p40 = pneg %p34
      %p41 = scmp.eq.s32.totalorder %s11, 7
      %p42 = por %p40, %p41
      %p43 = scmp.ne.s32.totalorder %s35, %s38
      %p44 = scmp.eq.s32.totalorder %s11, 0
      %p45 = por %p43, %p44
      %p46 = scmp.ne.s32.totalorder %s35, %s38
      %p47 = scmp.eq.s32.totalorder %s16, 7
      %p48 = por %p46, %p47
      %p49 = scmp.ne.s32.totalorder %s38, %s39
      %p50 = scmp.eq.s32.totalorder %s16, 0
      %p51 = por %p49, %p50
      %p52 = scmp.ne.s32.totalorder %s38, %s39
      %p53 = scmp.eq.s32.totalorder %s17, 7
      %p54 = por %p52, %p53
      %p56 = scmp.ne.s32.totalorder %s39, %s55
      %p57 = scmp.eq.s32.totalorder %s17, 0
      %p58 = por %p56, %p57
      %s59 = ssub.s32 %s18, %s30
      %p60 = scmp.eq.s32.totalorder %s59, 0
      %s62 = sadd.s32 %s61, 1
      %s63 = scalar_select %p60, %s61, %s62
      %p66 = pneg %p60
      %p67 = scmp.eq.s32.totalorder %s11, 7
      %p68 = por %p66, %p67
      %p69 = scmp.ne.s32.totalorder %s61, %s64
      %p70 = scmp.eq.s32.totalorder %s11, 0
      %p71 = por %p69, %p70
      %p72 = scmp.ne.s32.totalorder %s61, %s64
      %p73 = scmp.eq.s32.totalorder %s16, 7
      %p74 = por %p72, %p73
      %p75 = scmp.ne.s32.totalorder %s64, %s65
      %p76 = scmp.eq.s32.totalorder %s16, 0
      %p77 = por %p75, %p76
      %p78 = scmp.ne.s32.totalorder %s64, %s65
      %p79 = scmp.eq.s32.totalorder %s17, 7
      %p80 = por %p78, %p79
      %p82 = scmp.ne.s32.totalorder %s65, %s81
      %p83 = scmp.eq.s32.totalorder %s17, 0
      %p84 = por %p82, %p83
      %s85 = ssub.s32 %s18, %s30
      %s86 = ssub.s32 %s19, %s26
      %s87 = sor.u32 %s85, %s86
      %p88 = scmp.eq.s32.totalorder %s87, 0
      %s90 = sadd.s32 %s89, 1
      %s91 = scalar_select %p88, %s89, %s90
      %p94 = pneg %p88
      %p95 = scmp.eq.s32.totalorder %s11, 7
      %p96 = por %p94, %p95
      %p97 = scmp.ne.s32.totalorder %s89, %s92
      %p98 = scmp.eq.s32.totalorder %s11, 0
      %p99 = por %p97, %p98
      %p100 = scmp.ne.s32.totalorder %s89, %s92
      %p101 = scmp.eq.s32.totalorder %s16, 7
      %p102 = por %p100, %p101
      %p103 = scmp.ne.s32.totalorder %s92, %s93
      %p104 = scmp.eq.s32.totalorder %s16, 0
      %p105 = por %p103, %p104
      %p106 = scmp.ne.s32.totalorder %s92, %s93
      %p107 = scmp.eq.s32.totalorder %s17, 7
      %p108 = por %p106, %p107
      %p110 = scmp.ne.s32.totalorder %s93, %s109
      %p111 = scmp.eq.s32.totalorder %s17, 0
      %p112 = por %p110, %p111
      %p113 = scmp.le.s32.totalorder 1, %s11
      %p114 = scmp.lt.s32.totalorder %s11, 9
      %p115 = pnand %p113, %p114
      %p116 = pneg %p115
      // Predicated region
      $region9: #{tpu_custom_call.1} parent=5 // pred_check
        _
      $region10: #{tpu_custom_call.1} parent=5 // pred_check_branch
        %118 = sbr.rel (%p115) target = $region12
      $region11: #{tpu_custom_call.1} parent=5 // pred_region
        %s119 = ssub.s32 %s11, 1
      $region12: #{tpu_custom_call.1} parent=5 // pred_fallthru
        _
      %p120 = scmp.lt.s32.totalorder %s11, 8
      // Predicated region
      $region13: #{tpu_custom_call.1} parent=5 // pred_check
        %p121 = pneg %p120
      $region14: #{tpu_custom_call.1} parent=5 // pred_check_branch
        %123 = sbr.rel (%p121) target = $region16
      $region15: #{tpu_custom_call.1} parent=5 // pred_region
        // Predicated region
        $region17: #{tpu_custom_call.1} parent=15 // pred_check
          %p124 = pneg %p45
        $region18: #{tpu_custom_call.1} parent=15 // pred_check_branch
          %126 = sbr.rel (%p124) target = $region20
        $region19: #{tpu_custom_call.1} parent=15 // pred_region
          %p127 = scmp.lt.s32.totalorder %s18, 7
          %s128 = scalar_select %p127, %s18, 7
          %p129 = scmp.lt.s32.totalorder %s19, 0
          %s130 = scalar_select %p129, %s19, 0
          %s131 = sadd.s32 %s130, %s128
          %s132 = smul.addr %s131, 2
          %s133 = scalar_lea.vmem %s0, %s132
        $region20: #{tpu_custom_call.1} parent=15 // pred_fallthru
          _
        // Predicated region
        $region21: #{tpu_custom_call.1} parent=15 // pred_check
          %p134 = pneg %p71
        $region22: #{tpu_custom_call.1} parent=15 // pred_check_branch
          %136 = sbr.rel (%p134) target = $region24
        $region23: #{tpu_custom_call.1} parent=15 // pred_region
          %p137 = scmp.lt.s32.totalorder %s18, 7
          %s138 = scalar_select %p137, %s18, 7
          %s139 = smul.addr %s138, 4
          %s140 = smul.addr %s139, 8
          %s141 = scalar_lea.vmem %s1, %s140
        $region24: #{tpu_custom_call.1} parent=15 // pred_fallthru
          _
      $region16: #{tpu_custom_call.1} parent=5 // pred_fallthru
        _
      %p142 = scmp.le.s32.totalorder 1, %s11
      %p143 = scmp.lt.s32.totalorder %s11, 9
      %p144 = pnand %p142, %p143
      %p145 = pneg %p144
      // Predicated region
      $region25: #{tpu_custom_call.1} parent=5 // pred_check
        _
      $region26: #{tpu_custom_call.1} parent=5 // pred_check_branch
        %147 = sbr.rel (%p144) target = $region28
      $region27: #{tpu_custom_call.1} parent=5 // pred_region
        %s148 = ssub.s32 %s11, 1
        %p149 = scmp.lt.s32.totalorder %s20, 7
        %s150 = scalar_select %p149, %s20, 7
        %p151 = scmp.lt.s32.totalorder %s21, 0
        %s152 = scalar_select %p151, %s21, 0
        %s153 = sadd.s32 %s152, %s150
        %s154 = smul.addr %s153, 2
        %s155 = scalar_lea.vmem %s0, %s154
        %p156 = pneg %p51
        %p157 = pneg %p48
        %p158 = scmp.lt.s32.totalorder %s20, 7
        %s159 = scalar_select %p158, %s20, 7
        %s160 = smul.addr %s159, 4
        %s161 = smul.addr %s160, 8
        %s162 = scalar_lea.vmem %s1, %s161
        %p163 = pneg %p77
        %p164 = pneg %p74
        %p165 = pneg %p105
        %p166 = pneg %p102
        %s167 = sand.u32 %s92, 1
        %s168 = scalar_lea.sflag [#allocation3], %s167
        %s169 = sand.u32 %s92, 1
        %s170 = smul.addr %s169, 2
        %s171 = scalar_lea.vmem [#allocation2], %s170
        %p172 = scmp.lt.s32.totalorder %s20, 7
        %s173 = scalar_select %p172, %s20, 7
        %p174 = scmp.lt.s32.totalorder %s21, 0
        %s175 = scalar_select %p174, %s21, 0
        %s176 = sadd.s32 %s175, %s173
        %s177 = smul.addr %s176, 2
        %s178 = scalar_lea.vmem %s0, %s177
        %p179 = scmp.lt.s32.totalorder %s20, 7
        %s180 = scalar_select %p179, %s20, 7
        %s181 = smul.addr %s180, 4
        %s182 = smul.addr %s181, 8
        %s183 = scalar_lea.vmem %s1, %s182
        %v184 = vld [vmem:[%s178] sm:$0x3]
        %v185 = vld [vmem:[%s183] sm:$0xff]
        %v186 = vld [vmem:[%s183 + $0x8] sm:$0xff]
        %v187 = vld [vmem:[%s183 + $0x10] sm:$0xff]
        %v188 = vld [vmem:[%s183 + $0x18] sm:$0xff]
        %vm189 = vcmask 261120
        %v191 = vsel %vm189, %v184, 0
        %193 = vmatprep.subr.mxu0 0.0
        %194 = vmatpush1.msra.mxu0 0.0
        %195 = vmatprep.subr.mxu0 0.0
        %196 = vmatpush1.msra.mxu0 0.0
        %197 = vmatprep.subr.mxu0 0.0
        %198 = vmatpush1.msra.mxu0 0.0
        %199 = vmatprep.subr.mxu0 0.0
        %200 = vmatpush1.msra.mxu0 0.0
        %201 = vmatprep.subr.mxu0 0.0
        %202 = vmatpush1.msra.mxu0 0.0
        %203 = vmatprep.subr.mxu0 0.0
        %204 = vmatpush1.msra.mxu0 0.0
        %205 = vmatprep.subr.mxu0 0.0
        %206 = vmatpush1.msra.mxu0 0.0
        %207 = vmatprep.subr.mxu0 0.0
        %208 = vmatpush1.msra.mxu0 0.0
        %209 = vmatprep.subr.mxu0 0.0
        %210 = vmatpush1.msra.mxu0 0.0
        %211 = vmatprep.subr.mxu0 0.0
        %212 = vmatpush1.msra.mxu0 0.0
        %213 = vmatprep.subr.mxu0 0.0
        %214 = vmatpush1.msra.mxu0 0.0
        %215 = vmatprep.subr.mxu0 0.0
        %216 = vmatpush1.msra.mxu0 0.0
        %217 = vmatprep.subr.mxu0 0.0
        %218 = vmatpush1.msra.mxu0 %v188
        %219 = vmatprep.subr.mxu0 0.0
        %220 = vmatpush1.msra.mxu0 %v187
        %221 = vmatprep.subr.mxu0 0.0
        %222 = vmatpush1.msra.mxu0 %v186
        %223 = vmatprep.subr.mxu0 0.0
        %224 = vmatpush1.msra.mxu0 %v185
        %225 = vmatprep.subr.mxu0 0.0
        %226 = vmatpush2.msra.mxu0 0.0
        %227 = vmatprep.subr.mxu0 0.0
        %228 = vmatpush2.msra.mxu0 0.0
        %229 = vmatprep.subr.mxu0 0.0
        %230 = vmatpush2.msra.mxu0 0.0
        %231 = vmatprep.subr.mxu0 0.0
        %232 = vmatpush2.msra.mxu0 0.0
        %233 = vmatprep.subr.mxu0 0.0
        %234 = vmatpush2.msra.mxu0 0.0
        %235 = vmatprep.subr.mxu0 0.0
        %236 = vmatpush2.msra.mxu0 0.0
        %237 = vmatprep.subr.mxu0 0.0
        %238 = vmatpush2.msra.mxu0 0.0
        %239 = vmatprep.subr.mxu0 0.0
        %240 = vmatpush2.msra.mxu0 0.0
        %241 = vmatprep.subr.mxu0 0.0
        %242 = vmatpush2.msra.mxu0 0.0
        %243 = vmatprep.subr.mxu0 0.0
        %244 = vmatpush2.msra.mxu0 0.0
        %245 = vmatprep.subr.mxu0 0.0
        %246 = vmatpush2.msra.mxu0 0.0
        %247 = vmatprep.subr.mxu0 0.0
        %248 = vmatpush2.msra.mxu0 0.0
        %249 = vmatprep.subr.mxu0 0.0
        %250 = vmatpush2.msra.mxu0 0.0
        %251 = vmatprep.subr.mxu0 0.0
        %252 = vmatpush2.msra.mxu0 0.0
        %253 = vmatprep.subr.mxu0 0.0
        %254 = vmatpush2.msra.mxu0 0.0
        %255 = vmatprep.subr.mxu0 0.0
        %256 = vmatpush2.msra.mxu0 0.0
        %257 = vmatprep.mubr.f32.mxu0 0.0
        %258 = vmatmul.mubr.f32.gmra.mxu0 %v191
        %v259 = vpop.f32.mrf.mxu0
        %v260 = vadd.f32 0.0, %v259
        %v261 = vpop.f32.mrf.mxu0
        %262 = vdwg.mxu0
        %vm263 = vcmask 123904
        %264 = vst.msk [vmem:[%s171] sm:$0x3] %vm263, %v260
        %s265 = sand.u32 %s92, 1
        %s266 = scalar_lea.sflag [#allocation3], %s265
        %s267 = sand.u32 %s92, 1
        %s268 = smul.addr %s267, 2
        %s269 = scalar_lea.vmem [#allocation2], %s268
        // Predicated region
        $region29: #{tpu_custom_call.1} parent=27 // pred_check
          %p270 = pneg %p102
        $region30: #{tpu_custom_call.1} parent=27 // pred_check_branch
          %272 = sbr.rel (%p270) target = $region32
        $region31: #{tpu_custom_call.1} parent=27 // pred_region
          %s274 = ssub.s32 32, 32
          %275 = vsyncadd %s266, %s274
          %s276 = sadd.s32 %s21, %s20
          %s277 = smul.addr %s276, 32
          %s278 = scalar_lea.hbm %s2, %s277
          %s280 = sshll.u32 %s269, 4
          %s281 = int_to_ptr.vmem [resolvable:$true] %s280
          %283 = dma.vmem_to_hbm [thread:$0]  %s281, 32, %s278, %s266
        $region32: #{tpu_custom_call.1} parent=27 // pred_fallthru
          _
      $region28: #{tpu_custom_call.1} parent=5 // pred_fallthru
        _
      %p284 = scmp.le.s32.totalorder 2, %s11
      // Predicated region
      $region33: #{tpu_custom_call.1} parent=5 // pred_check
        %p285 = pneg %p284
      $region34: #{tpu_custom_call.1} parent=5 // pred_check_branch
        %287 = sbr.rel (%p285) target = $region36
      $region35: #{tpu_custom_call.1} parent=5 // pred_region
        %s288 = ssub.s32 %s11, 2
        // Predicated region
        $region37: #{tpu_custom_call.1} parent=35 // pred_check
          %p289 = pneg %p108
        $region38: #{tpu_custom_call.1} parent=35 // pred_check_branch
          %291 = sbr.rel (%p289) target = $region40
        $region39: #{tpu_custom_call.1} parent=35 // pred_region
          %s292 = sand.u32 %s93, 1
          %s293 = scalar_lea.sflag [#allocation3], %s292
          %s294 = sand.u32 %s93, 1
          %s295 = smul.addr %s294, 2
          %s296 = scalar_lea.vmem [#allocation2], %s295
          %297 = dma.done %s293, 32
        $region40: #{tpu_custom_call.1} parent=35 // pred_fallthru
          _
      $region36: #{tpu_custom_call.1} parent=5 // pred_fallthru
        _
    $region6: #{tpu_custom_call.1} parent=1 // loop_footer
      %s15 = sadd.s32 1, %s11
    $region7: #{tpu_custom_call.1} parent=1 // loop_footer_branch
      %10 = sbr.rel target = $region3
    $region8: #{tpu_custom_call.1} parent=1 // loop_exit
      _
    %298 = vsyncpa [#allocation3], 1
    %s299 = scalar_lea.sflag [#allocation3], 1
    %300 = vsyncpa %s299, 1

</llo_original>
